<compile_context>
chip_gen: v7x
topology: tpu7x:2x2x1
jax: 0.10.0
libtpu: 0.0.40
codegen_flags: <defaults>
</compile_context>

<pallas_src>
import jax
import jax.numpy as jnp
from jax.experimental import pallas as pl
from jax.experimental.pallas import tpu as pltpu

EPS = 1e-5
NUM_P_ROWS = 16  # 9 real parameter rows + zero padding rows (sublane friendly)


def _round_up(n, m):
    return ((n + m - 1) // m) * m


# -----------------------------------------------------------------------------
# Kernel
# -----------------------------------------------------------------------------
def varmax_kernel(x_ref, w_ref, p_ref, o_ref, xpad_ref):
    # x_ref   : (Gt, B, IN)  f32  unpadded input features for Gt groups
    # w_ref   : (4, F, F)    bf16 fc1..fc4 zero-padded, VMEM-resident
    # p_ref   : (16, F)      f32  row-packed BN gammas/betas + final bias
    # o_ref   : (Gt, B, F)   f32  lane-dense output (real cols sliced in wrapper)
    # xpad_ref: (Gt, B, F)   f32  VMEM scratch for in-kernel zero-padding of x
    Gt, B, IN = x_ref.shape
    F = o_ref.shape[-1]
    R = Gt * B

    # In-kernel zero-pad of the raw input (no padded HBM round trip).
    xpad_ref[...] = jnp.zeros_like(xpad_ref)
    xpad_ref[:, :, :IN] = x_ref[...]

    p = p_ref[...]                       # (16, F)
    g0, be0 = p[0:1], p[1:2]
    g1, be1 = p[2:3], p[3:4]
    g2, be2 = p[4:5], p[5:6]
    g3, be3 = p[6:7], p[7:8]
    b4 = p[8:9]

    def bn(h2d, gamma, beta):
        # training-mode BatchNorm1d, stats per group over the batch axis.
        hg = h2d.reshape(Gt, B, F)
        mean = jnp.mean(hg, axis=1, keepdims=True)                     # (Gt,1,F)
        var = jnp.maximum(
            jnp.mean(hg * hg, axis=1, keepdims=True) - mean * mean, 0.0
        )
        hn = ((hg - mean) * jax.lax.rsqrt(var + EPS)).reshape(R, F)
        return hn * gamma + beta

    x = xpad_ref[...].reshape(R, F)

    h = bn(x, g0, be0)

    h = jnp.dot(h.astype(jnp.bfloat16), w_ref[0],
                preferred_element_type=jnp.float32)
    h = jnp.maximum(bn(h, g1, be1), 0.0)

    h = jnp.dot(h.astype(jnp.bfloat16), w_ref[1],
                preferred_element_type=jnp.float32)
    h = jnp.maximum(bn(h, g2, be2), 0.0)

    h = jnp.dot(h.astype(jnp.bfloat16), w_ref[2],
                preferred_element_type=jnp.float32)
    h = jnp.maximum(bn(h, g3, be3), 0.0)

    h = jnp.dot(h.astype(jnp.bfloat16), w_ref[3],
                preferred_element_type=jnp.float32) + b4
    e = jnp.exp(-h)                                          # EUP
    o_ref[...] = pl.reciprocal(1.0 + e, approx=True).reshape(Gt, B, F)


# -----------------------------------------------------------------------------
# Parameter packing
# -----------------------------------------------------------------------------
def _pack_params(params, sizes, F):
    input_size, hidden_size, h2, h4, output_size = sizes

    w = jnp.zeros((4, F, F), jnp.float32)
    w = w.at[0, :input_size, :hidden_size].set(params["w1"])
    w = w.at[1, :hidden_size, :h2].set(params["w2"])
    w = w.at[2, :h2, :h4].set(params["w3"])
    w = w.at[3, :h4, :output_size].set(params["w4"])
    w = w.astype(jnp.bfloat16)                 # bf16 MXU operands, half the DMA

    def pad_row(v):
        v = v.reshape(-1)
        return jnp.pad(v, (0, F - v.shape[0]))  # zero-padded (invariant!)

    rows = [
        params["g0"], params["be0"],
        params["g1"], params["be1"],
        params["g2"], params["be2"],
        params["g3"], params["be3"],
        params["b4"],                           # b1..b3 dropped (cancel in BN)
    ]
    rows = [pad_row(r) for r in rows]
    rows += [jnp.zeros((F,), jnp.float32)] * (NUM_P_ROWS - len(rows))
    return w, jnp.stack(rows, axis=0)           # (4,F,F) bf16, (16,F) f32


# -----------------------------------------------------------------------------
# Wrapper
# -----------------------------------------------------------------------------
def varmax_forward(x, params, *, groups_per_step=4):
    """x: (G, B, input_size) float32 — G independent batches of size B."""
    G, B, input_size = x.shape
    hidden_size = params["w1"].shape[1]
    h2 = params["w2"].shape[1]
    h4 = params["w3"].shape[1]
    output_size = params["w4"].shape[1]

    F = _round_up(max(input_size, hidden_size, h2, h4, output_size, 1), 128)

    Gt = max(1, min(groups_per_step, G))
    G_pad = _round_up(G, Gt)
    if G_pad != G:
        # zero groups: BN of all-zero batch is well defined (mean=0, var=0)
        x = jnp.pad(x, ((0, G_pad - G), (0, 0), (0, 0)))

    w_slab, p_slab = _pack_params(
        params, (input_size, hidden_size, h2, h4, output_size), F
    )

    out = pl.pallas_call(
        varmax_kernel,
        out_shape=jax.ShapeDtypeStruct((G_pad, B, F), jnp.float32),
        grid=(G_pad // Gt,),
        in_specs=[
            pl.BlockSpec((Gt, B, input_size), lambda g: (g, 0, 0)),  # unpadded x
            pl.BlockSpec((4, F, F), lambda g: (0, 0, 0)),            # weights, resident
            pl.BlockSpec((NUM_P_ROWS, F), lambda g: (0, 0)),         # vec params, resident
        ],
        out_specs=pl.BlockSpec((Gt, B, F), lambda g: (g, 0, 0)),
        scratch_shapes=[pltpu.VMEM((Gt, B, F), jnp.float32)],
        compiler_params=pltpu.CompilerParams(
            dimension_semantics=("parallel",),       # shard groups across TCs
            vmem_limit_bytes=32 * 1024 * 1024,
        ),
    )(x, w_slab, p_slab)

    return out[:G, :, :output_size]


# -----------------------------------------------------------------------------
# Parameter init (deterministic synthetic weights; no checkpoint loading)
# -----------------------------------------------------------------------------
def init_params(key, input_size, hidden_size, output_size):
    h2, h4 = hidden_size // 2, hidden_size // 4
    keys = jax.random.split(key, 8)

    def lin(kw, kb, fan_in, fan_out):
        bound = 1.0 / jnp.sqrt(float(fan_in))
        w = jax.random.uniform(kw, (fan_in, fan_out), jnp.float32, -bound, bound)
        b = jax.random.uniform(kb, (1, fan_out), jnp.float32, -bound, bound)
        return w, b

    w1, b1 = lin(keys[0], keys[1], input_size, hidden_size)
    w2, b2 = lin(keys[2], keys[3], hidden_size, h2)
    w3, b3 = lin(keys[4], keys[5], h2, h4)
    w4, b4 = lin(keys[6], keys[7], h4, output_size)

    def bn(f):
        return jnp.ones((1, f), jnp.float32), jnp.zeros((1, f), jnp.float32)

    g0, be0 = bn(input_size)
    g1, be1 = bn(hidden_size)
    g2, be2 = bn(h2)
    g3, be3 = bn(h4)

    return dict(
        g0=g0, be0=be0,
        w1=w1, b1=b1, g1=g1, be1=be1,
        w2=w2, b2=b2, g2=g2, be2=be2,
        w3=w3, b3=b3, g3=g3, be3=be3,
        w4=w4, b4=b4,
    )


# -----------------------------------------------------------------------------
# Pure-JAX reference (same bf16 matmul recipe; keeps the b1..b3 biases to
# confirm they indeed cancel under training-mode BatchNorm)
# -----------------------------------------------------------------------------
def _varmax_ref_single(x, p):
    def bn(h, g, b):
        m = jnp.mean(h, axis=0, keepdims=True)
        v = jnp.mean((h - m) ** 2, axis=0, keepdims=True)
        return (h - m) * jax.lax.rsqrt(v + EPS) * g + b

    def dot(h, w):
        return jnp.dot(h.astype(jnp.bfloat16), w.astype(jnp.bfloat16),
                       preferred_element_type=jnp.float32)

    h = bn(x, p["g0"], p["be0"])
    h = jnp.maximum(bn(dot(h, p["w1"]) + p["b1"], p["g1"], p["be1"]), 0.0)
    h = jnp.maximum(bn(dot(h, p["w2"]) + p["b2"], p["g2"], p["be2"]), 0.0)
    h = jnp.maximum(bn(dot(h, p["w3"]) + p["b3"], p["g3"], p["be3"]), 0.0)
    return jax.nn.sigmoid(dot(h, p["w4"]) + p["b4"])


def varmax_ref(x, p):
    # each group is an independent forward call (its own batch statistics)
    return jax.vmap(lambda xg: _varmax_ref_single(xg, p))(x)


if __name__ == "__main__":
    input_size, hidden_size, output_size = 16, 32, 4
    G, B = 8, 8  # 8 independent batches of 8 samples

    key = jax.random.PRNGKey(0)
    kx, kp = jax.random.split(key)
    x = jax.random.normal(kx, (G, B, input_size), jnp.float32)
    params = init_params(kp, input_size, hidden_size, output_size)

    out = varmax_forward(x, params, groups_per_step=4)   # grid of 2 steps
    out = jax.block_until_ready(out)

    ref = varmax_ref(x, params)
    assert out.shape == (G, B, output_size)
    assert jnp.allclose(out, ref, atol=5e-3, rtol=5e-3), (
        f"max abs diff {jnp.max(jnp.abs(out - ref))}"
    )
    print("KERNEL_OK")
</pallas_src>

<mosaic_0001>
module attributes {stable_mosaic.version = 11 : i64} {
  func.func @varmax_kernel(%arg0: i32, %arg1: memref<4x8x16xf32, #tpu.memory_space<vmem>>, %arg2: memref<4x128x128xbf16, #tpu.memory_space<vmem>>, %arg3: memref<16x128xf32, #tpu.memory_space<vmem>>, %arg4: memref<4x8x128xf32, #tpu.memory_space<vmem>>, %arg5: memref<4x8x128xf32, #tpu.memory_space<vmem>>) attributes {dimension_semantics = [#tpu.dimension_semantics<parallel>], iteration_bounds = array<i64: 2>, scalar_prefetch = 0 : i64, scratch_operands = 1 : i64, tpu.core_type = #tpu.core_type<tc>, window_params = [{transform_indices = @transform_0, window_bounds = array<i64: 4, 8, 16>}, {pipeline_mode = #tpu.pipeline_mode<synchronous>, transform_indices = @transform_1, window_bounds = array<i64: 4, 128, 128>}, {pipeline_mode = #tpu.pipeline_mode<synchronous>, transform_indices = @transform_2, window_bounds = array<i64: 16, 128>}, {transform_indices = @transform_3, window_bounds = array<i64: 4, 8, 128>}]} {
    %cst = arith.constant 0.000000e+00 : f32
    %0 = vector.broadcast %cst : f32 to vector<4x8x128xf32>
    %c0 = arith.constant 0 : index
    %c0_0 = arith.constant 0 : index
    %c0_1 = arith.constant 0 : index
    %1 = vector.load %arg5[%c0, %c0_0, %c0_1] : memref<4x8x128xf32, #tpu.memory_space<vmem>>, vector<4x8x128xf32>
    tpu.vector_store %arg5[%c0, %c0_0, %c0_1], %0 {strides = array<i32>} : memref<4x8x128xf32, #tpu.memory_space<vmem>>, vector<4x8x128xf32>,
    %c0_2 = arith.constant 0 : index
    %c0_3 = arith.constant 0 : index
    %c0_4 = arith.constant 0 : index
    %2 = vector.load %arg1[%c0_2, %c0_3, %c0_4] : memref<4x8x16xf32, #tpu.memory_space<vmem>>, vector<4x8x16xf32>
    %c0_5 = arith.constant 0 : index
    %c0_6 = arith.constant 0 : index
    %c0_7 = arith.constant 0 : index
    %3 = vector.load %arg5[%c0_5, %c0_6, %c0_7] : memref<4x8x128xf32, #tpu.memory_space<vmem>>, vector<4x8x16xf32>
    tpu.vector_store %arg5[%c0_5, %c0_6, %c0_7], %2 {strides = array<i32>} : memref<4x8x128xf32, #tpu.memory_space<vmem>>, vector<4x8x16xf32>,
    %c0_8 = arith.constant 0 : index
    %c0_9 = arith.constant 0 : index
    %4 = vector.load %arg3[%c0_8, %c0_9] : memref<16x128xf32, #tpu.memory_space<vmem>>, vector<16x128xf32>
    %5 = vector.extract_strided_slice %4 {offsets = [0, 0], sizes = [1, 128], strides = [1, 1]} : vector<16x128xf32> to vector<1x128xf32>
    %6 = vector.extract_strided_slice %4 {offsets = [1, 0], sizes = [1, 128], strides = [1, 1]} : vector<16x128xf32> to vector<1x128xf32>
    %7 = vector.extract_strided_slice %4 {offsets = [2, 0], sizes = [1, 128], strides = [1, 1]} : vector<16x128xf32> to vector<1x128xf32>
    %8 = vector.extract_strided_slice %4 {offsets = [3, 0], sizes = [1, 128], strides = [1, 1]} : vector<16x128xf32> to vector<1x128xf32>
    %9 = vector.extract_strided_slice %4 {offsets = [4, 0], sizes = [1, 128], strides = [1, 1]} : vector<16x128xf32> to vector<1x128xf32>
    %10 = vector.extract_strided_slice %4 {offsets = [5, 0], sizes = [1, 128], strides = [1, 1]} : vector<16x128xf32> to vector<1x128xf32>
    %11 = vector.extract_strided_slice %4 {offsets = [6, 0], sizes = [1, 128], strides = [1, 1]} : vector<16x128xf32> to vector<1x128xf32>
    %12 = vector.extract_strided_slice %4 {offsets = [7, 0], sizes = [1, 128], strides = [1, 1]} : vector<16x128xf32> to vector<1x128xf32>
    %13 = vector.extract_strided_slice %4 {offsets = [8, 0], sizes = [1, 128], strides = [1, 1]} : vector<16x128xf32> to vector<1x128xf32>
    %c0_10 = arith.constant 0 : index
    %c0_11 = arith.constant 0 : index
    %c0_12 = arith.constant 0 : index
    %14 = vector.load %arg5[%c0_10, %c0_11, %c0_12] : memref<4x8x128xf32, #tpu.memory_space<vmem>>, vector<4x8x128xf32>
    %15 = vector.shape_cast %14 : vector<4x8x128xf32> to vector<32x128xf32>
    %16 = vector.shape_cast %15 : vector<32x128xf32> to vector<4x8x128xf32>
    %cst_13 = arith.constant dense<0.000000e+00> : vector<4x128xf32>
    %17 = vector.multi_reduction <add>, %16, %cst_13 [1] : vector<4x8x128xf32> to vector<4x128xf32>
    %18 = vector.shape_cast %17 : vector<4x128xf32> to vector<4x1x128xf32>
    %cst_14 = arith.constant 8.000000e+00 : f32
    %19 = vector.broadcast %cst_14 : f32 to vector<4x1x128xf32>
    %20 = arith.divf %18, %19 : vector<4x1x128xf32>
    %21 = arith.mulf %16, %16 : vector<4x8x128xf32>
    %cst_15 = arith.constant dense<0.000000e+00> : vector<4x128xf32>
    %22 = vector.multi_reduction <add>, %21, %cst_15 [1] : vector<4x8x128xf32> to vector<4x128xf32>
    %23 = vector.shape_cast %22 : vector<4x128xf32> to vector<4x1x128xf32>
    %cst_16 = arith.constant 8.000000e+00 : f32
    %24 = vector.broadcast %cst_16 : f32 to vector<4x1x128xf32>
    %25 = arith.divf %23, %24 : vector<4x1x128xf32>
    %26 = arith.mulf %20, %20 : vector<4x1x128xf32>
    %27 = arith.subf %25, %26 : vector<4x1x128xf32>
    %cst_17 = arith.constant 0.000000e+00 : f32
    %28 = vector.broadcast %cst_17 : f32 to vector<4x1x128xf32>
    %29 = arith.maximumf %27, %28 : vector<4x1x128xf32>
    %30 = vector.broadcast %20 : vector<4x1x128xf32> to vector<4x8x128xf32>
    %31 = arith.subf %16, %30 : vector<4x8x128xf32>
    %cst_18 = arith.constant 9.99999974E-6 : f32
    %32 = vector.broadcast %cst_18 : f32 to vector<4x1x128xf32>
    %33 = arith.addf %29, %32 : vector<4x1x128xf32>
    %34 = math.rsqrt %33 : vector<4x1x128xf32>
    %35 = vector.broadcast %34 : vector<4x1x128xf32> to vector<4x8x128xf32>
    %36 = arith.mulf %31, %35 : vector<4x8x128xf32>
    %37 = vector.shape_cast %36 : vector<4x8x128xf32> to vector<32x128xf32>
    %38 = vector.broadcast %5 : vector<1x128xf32> to vector<32x128xf32>
    %39 = arith.mulf %37, %38 : vector<32x128xf32>
    %40 = vector.broadcast %6 : vector<1x128xf32> to vector<32x128xf32>
    %41 = arith.addf %39, %40 : vector<32x128xf32>
    %42 = arith.truncf %41 : vector<32x128xf32> to vector<32x128xbf16>
    %c0_19 = arith.constant 0 : index
    %c0_20 = arith.constant 0 : index
    %c0_21 = arith.constant 0 : index
    %43 = vector.load %arg2[%c0_19, %c0_20, %c0_21] : memref<4x128x128xbf16, #tpu.memory_space<vmem>>, vector<1x128x128xbf16>
    %44 = vector.shape_cast %43 : vector<1x128x128xbf16> to vector<128x128xbf16>
    %cst_22 = arith.constant dense<0.000000e+00> : vector<32x128xf32>
    %45 = tpu.matmul %42, %44, %cst_22 {dimension_numbers = #tpu.dot_dimension_numbers<[1], [0], [0], [1], [0, 0, 1, 1], [], []>} : vector<32x128xbf16>, vector<128x128xbf16>, vector<32x128xf32> -> vector<32x128xf32>
    %46 = vector.shape_cast %45 : vector<32x128xf32> to vector<4x8x128xf32>
    %cst_23 = arith.constant dense<0.000000e+00> : vector<4x128xf32>
    %47 = vector.multi_reduction <add>, %46, %cst_23 [1] : vector<4x8x128xf32> to vector<4x128xf32>
    %48 = vector.shape_cast %47 : vector<4x128xf32> to vector<4x1x128xf32>
    %cst_24 = arith.constant 8.000000e+00 : f32
    %49 = vector.broadcast %cst_24 : f32 to vector<4x1x128xf32>
    %50 = arith.divf %48, %49 : vector<4x1x128xf32>
    %51 = arith.mulf %46, %46 : vector<4x8x128xf32>
    %cst_25 = arith.constant dense<0.000000e+00> : vector<4x128xf32>
    %52 = vector.multi_reduction <add>, %51, %cst_25 [1] : vector<4x8x128xf32> to vector<4x128xf32>
    %53 = vector.shape_cast %52 : vector<4x128xf32> to vector<4x1x128xf32>
    %cst_26 = arith.constant 8.000000e+00 : f32
    %54 = vector.broadcast %cst_26 : f32 to vector<4x1x128xf32>
    %55 = arith.divf %53, %54 : vector<4x1x128xf32>
    %56 = arith.mulf %50, %50 : vector<4x1x128xf32>
    %57 = arith.subf %55, %56 : vector<4x1x128xf32>
    %cst_27 = arith.constant 0.000000e+00 : f32
    %58 = vector.broadcast %cst_27 : f32 to vector<4x1x128xf32>
    %59 = arith.maximumf %57, %58 : vector<4x1x128xf32>
    %60 = vector.broadcast %50 : vector<4x1x128xf32> to vector<4x8x128xf32>
    %61 = arith.subf %46, %60 : vector<4x8x128xf32>
    %cst_28 = arith.constant 9.99999974E-6 : f32
    %62 = vector.broadcast %cst_28 : f32 to vector<4x1x128xf32>
    %63 = arith.addf %59, %62 : vector<4x1x128xf32>
    %64 = math.rsqrt %63 : vector<4x1x128xf32>
    %65 = vector.broadcast %64 : vector<4x1x128xf32> to vector<4x8x128xf32>
    %66 = arith.mulf %61, %65 : vector<4x8x128xf32>
    %67 = vector.shape_cast %66 : vector<4x8x128xf32> to vector<32x128xf32>
    %68 = vector.broadcast %7 : vector<1x128xf32> to vector<32x128xf32>
    %69 = arith.mulf %67, %68 : vector<32x128xf32>
    %70 = vector.broadcast %8 : vector<1x128xf32> to vector<32x128xf32>
    %71 = arith.addf %69, %70 : vector<32x128xf32>
    %cst_29 = arith.constant 0.000000e+00 : f32
    %72 = vector.broadcast %cst_29 : f32 to vector<32x128xf32>
    %73 = arith.maximumf %71, %72 : vector<32x128xf32>
    %74 = arith.truncf %73 : vector<32x128xf32> to vector<32x128xbf16>
    %c1 = arith.constant 1 : index
    %c0_30 = arith.constant 0 : index
    %c0_31 = arith.constant 0 : index
    %75 = vector.load %arg2[%c1, %c0_30, %c0_31] : memref<4x128x128xbf16, #tpu.memory_space<vmem>>, vector<1x128x128xbf16>
    %76 = vector.shape_cast %75 : vector<1x128x128xbf16> to vector<128x128xbf16>
    %cst_32 = arith.constant dense<0.000000e+00> : vector<32x128xf32>
    %77 = tpu.matmul %74, %76, %cst_32 {dimension_numbers = #tpu.dot_dimension_numbers<[1], [0], [0], [1], [0, 0, 1, 1], [], []>} : vector<32x128xbf16>, vector<128x128xbf16>, vector<32x128xf32> -> vector<32x128xf32>
    %78 = vector.shape_cast %77 : vector<32x128xf32> to vector<4x8x128xf32>
    %cst_33 = arith.constant dense<0.000000e+00> : vector<4x128xf32>
    %79 = vector.multi_reduction <add>, %78, %cst_33 [1] : vector<4x8x128xf32> to vector<4x128xf32>
    %80 = vector.shape_cast %79 : vector<4x128xf32> to vector<4x1x128xf32>
    %cst_34 = arith.constant 8.000000e+00 : f32
    %81 = vector.broadcast %cst_34 : f32 to vector<4x1x128xf32>
    %82 = arith.divf %80, %81 : vector<4x1x128xf32>
    %83 = arith.mulf %78, %78 : vector<4x8x128xf32>
    %cst_35 = arith.constant dense<0.000000e+00> : vector<4x128xf32>
    %84 = vector.multi_reduction <add>, %83, %cst_35 [1] : vector<4x8x128xf32> to vector<4x128xf32>
    %85 = vector.shape_cast %84 : vector<4x128xf32> to vector<4x1x128xf32>
    %cst_36 = arith.constant 8.000000e+00 : f32
    %86 = vector.broadcast %cst_36 : f32 to vector<4x1x128xf32>
    %87 = arith.divf %85, %86 : vector<4x1x128xf32>
    %88 = arith.mulf %82, %82 : vector<4x1x128xf32>
    %89 = arith.subf %87, %88 : vector<4x1x128xf32>
    %cst_37 = arith.constant 0.000000e+00 : f32
    %90 = vector.broadcast %cst_37 : f32 to vector<4x1x128xf32>
    %91 = arith.maximumf %89, %90 : vector<4x1x128xf32>
    %92 = vector.broadcast %82 : vector<4x1x128xf32> to vector<4x8x128xf32>
    %93 = arith.subf %78, %92 : vector<4x8x128xf32>
    %cst_38 = arith.constant 9.99999974E-6 : f32
    %94 = vector.broadcast %cst_38 : f32 to vector<4x1x128xf32>
    %95 = arith.addf %91, %94 : vector<4x1x128xf32>
    %96 = math.rsqrt %95 : vector<4x1x128xf32>
    %97 = vector.broadcast %96 : vector<4x1x128xf32> to vector<4x8x128xf32>
    %98 = arith.mulf %93, %97 : vector<4x8x128xf32>
    %99 = vector.shape_cast %98 : vector<4x8x128xf32> to vector<32x128xf32>
    %100 = vector.broadcast %9 : vector<1x128xf32> to vector<32x128xf32>
    %101 = arith.mulf %99, %100 : vector<32x128xf32>
    %102 = vector.broadcast %10 : vector<1x128xf32> to vector<32x128xf32>
    %103 = arith.addf %101, %102 : vector<32x128xf32>
    %cst_39 = arith.constant 0.000000e+00 : f32
    %104 = vector.broadcast %cst_39 : f32 to vector<32x128xf32>
    %105 = arith.maximumf %103, %104 : vector<32x128xf32>
    %106 = arith.truncf %105 : vector<32x128xf32> to vector<32x128xbf16>
    %c2 = arith.constant 2 : index
    %c0_40 = arith.constant 0 : index
    %c0_41 = arith.constant 0 : index
    %107 = vector.load %arg2[%c2, %c0_40, %c0_41] : memref<4x128x128xbf16, #tpu.memory_space<vmem>>, vector<1x128x128xbf16>
    %108 = vector.shape_cast %107 : vector<1x128x128xbf16> to vector<128x128xbf16>
    %cst_42 = arith.constant dense<0.000000e+00> : vector<32x128xf32>
    %109 = tpu.matmul %106, %108, %cst_42 {dimension_numbers = #tpu.dot_dimension_numbers<[1], [0], [0], [1], [0, 0, 1, 1], [], []>} : vector<32x128xbf16>, vector<128x128xbf16>, vector<32x128xf32> -> vector<32x128xf32>
    %110 = vector.shape_cast %109 : vector<32x128xf32> to vector<4x8x128xf32>
    %cst_43 = arith.constant dense<0.000000e+00> : vector<4x128xf32>
    %111 = vector.multi_reduction <add>, %110, %cst_43 [1] : vector<4x8x128xf32> to vector<4x128xf32>
    %112 = vector.shape_cast %111 : vector<4x128xf32> to vector<4x1x128xf32>
    %cst_44 = arith.constant 8.000000e+00 : f32
    %113 = vector.broadcast %cst_44 : f32 to vector<4x1x128xf32>
    %114 = arith.divf %112, %113 : vector<4x1x128xf32>
    %115 = arith.mulf %110, %110 : vector<4x8x128xf32>
    %cst_45 = arith.constant dense<0.000000e+00> : vector<4x128xf32>
    %116 = vector.multi_reduction <add>, %115, %cst_45 [1] : vector<4x8x128xf32> to vector<4x128xf32>
    %117 = vector.shape_cast %116 : vector<4x128xf32> to vector<4x1x128xf32>
    %cst_46 = arith.constant 8.000000e+00 : f32
    %118 = vector.broadcast %cst_46 : f32 to vector<4x1x128xf32>
    %119 = arith.divf %117, %118 : vector<4x1x128xf32>
    %120 = arith.mulf %114, %114 : vector<4x1x128xf32>
    %121 = arith.subf %119, %120 : vector<4x1x128xf32>
    %cst_47 = arith.constant 0.000000e+00 : f32
    %122 = vector.broadcast %cst_47 : f32 to vector<4x1x128xf32>
    %123 = arith.maximumf %121, %122 : vector<4x1x128xf32>
    %124 = vector.broadcast %114 : vector<4x1x128xf32> to vector<4x8x128xf32>
    %125 = arith.subf %110, %124 : vector<4x8x128xf32>
    %cst_48 = arith.constant 9.99999974E-6 : f32
    %126 = vector.broadcast %cst_48 : f32 to vector<4x1x128xf32>
    %127 = arith.addf %123, %126 : vector<4x1x128xf32>
    %128 = math.rsqrt %127 : vector<4x1x128xf32>
    %129 = vector.broadcast %128 : vector<4x1x128xf32> to vector<4x8x128xf32>
    %130 = arith.mulf %125, %129 : vector<4x8x128xf32>
    %131 = vector.shape_cast %130 : vector<4x8x128xf32> to vector<32x128xf32>
    %132 = vector.broadcast %11 : vector<1x128xf32> to vector<32x128xf32>
    %133 = arith.mulf %131, %132 : vector<32x128xf32>
    %134 = vector.broadcast %12 : vector<1x128xf32> to vector<32x128xf32>
    %135 = arith.addf %133, %134 : vector<32x128xf32>
    %cst_49 = arith.constant 0.000000e+00 : f32
    %136 = vector.broadcast %cst_49 : f32 to vector<32x128xf32>
    %137 = arith.maximumf %135, %136 : vector<32x128xf32>
    %138 = arith.truncf %137 : vector<32x128xf32> to vector<32x128xbf16>
    %c3 = arith.constant 3 : index
    %c0_50 = arith.constant 0 : index
    %c0_51 = arith.constant 0 : index
    %139 = vector.load %arg2[%c3, %c0_50, %c0_51] : memref<4x128x128xbf16, #tpu.memory_space<vmem>>, vector<1x128x128xbf16>
    %140 = vector.shape_cast %139 : vector<1x128x128xbf16> to vector<128x128xbf16>
    %cst_52 = arith.constant dense<0.000000e+00> : vector<32x128xf32>
    %141 = tpu.matmul %138, %140, %cst_52 {dimension_numbers = #tpu.dot_dimension_numbers<[1], [0], [0], [1], [0, 0, 1, 1], [], []>} : vector<32x128xbf16>, vector<128x128xbf16>, vector<32x128xf32> -> vector<32x128xf32>
    %142 = vector.broadcast %13 : vector<1x128xf32> to vector<32x128xf32>
    %143 = arith.addf %141, %142 : vector<32x128xf32>
    %cst_53 = arith.constant 0.000000e+00 : f32
    %144 = vector.broadcast %cst_53 : f32 to vector<32x128xf32>
    %145 = arith.subf %144, %143 : vector<32x128xf32>
    %146 = math.exp %145 : vector<32x128xf32>
    %cst_54 = arith.constant 1.000000e+00 : f32
    %147 = vector.broadcast %cst_54 : f32 to vector<32x128xf32>
    %148 = arith.addf %147, %146 : vector<32x128xf32>
    %149 = tpu.reciprocal %148 {approx = true} : vector<32x128xf32> -> vector<32x128xf32>
    %150 = vector.shape_cast %149 : vector<32x128xf32> to vector<4x8x128xf32>
    %c0_55 = arith.constant 0 : index
    %c0_56 = arith.constant 0 : index
    %c0_57 = arith.constant 0 : index
    %151 = vector.load %arg4[%c0_55, %c0_56, %c0_57] : memref<4x8x128xf32, #tpu.memory_space<vmem>>, vector<4x8x128xf32>
    tpu.vector_store %arg4[%c0_55, %c0_56, %c0_57], %150 {strides = array<i32>} : memref<4x8x128xf32, #tpu.memory_space<vmem>>, vector<4x8x128xf32>,
    return
  }
  func.func @transform_0(%arg0: i32) -> (i32, i32, i32) {
    %c0_i32 = arith.constant 0 : i32
    %c0_i32_0 = arith.constant 0 : i32
    %c0_i32_1 = arith.constant 0 : i32
    return %arg0, %c0_i32, %c0_i32_0 : i32, i32, i32
  }
  func.func @transform_1(%arg0: i32) -> (i32, i32, i32) {
    %c0_i32 = arith.constant 0 : i32
    %c0_i32_0 = arith.constant 0 : i32
    %c0_i32_1 = arith.constant 0 : i32
    %c0_i32_2 = arith.constant 0 : i32
    return %c0_i32, %c0_i32_0, %c0_i32_1 : i32, i32, i32
  }
  func.func @transform_2(%arg0: i32) -> (i32, i32) {
    %c0_i32 = arith.constant 0 : i32
    %c0_i32_0 = arith.constant 0 : i32
    %c0_i32_1 = arith.constant 0 : i32
    return %c0_i32, %c0_i32_0 : i32, i32
  }
  func.func @transform_3(%arg0: i32) -> (i32, i32, i32) {
    %c0_i32 = arith.constant 0 : i32
    %c0_i32_0 = arith.constant 0 : i32
    %c0_i32_1 = arith.constant 0 : i32
    return %arg0, %c0_i32, %c0_i32_0 : i32, i32, i32
  }
}

</mosaic_0001>

<llo_original>
// kernel: tpu_custom_call.1
$region0: #{tpu_custom_call.1}
  #allocation0 [shape = 'u32[]', space=smem, size = 0x4, offset = 0x4, fixed_abs, tag = 'smem constant byte address 0x4 - core index']
  #allocation1 [shape = 'u32[144,128]{1,0:T(1,128)}', space=vmem, size = 0x12000, scoped, tag = 'internal scratch']
  #allocation2 [shape = 'f32[4,8,128]{2,1,0:T(8,128)}', space=vmem, size = 0x4000, scoped, tag = 'scratch operand']
  %s0 = inlined_call_operand.hbm [shape: f32[8,8,16], index: 0, kind: input, shape index: {}]
  %s1 = inlined_call_operand.hbm [shape: bf16[4,128,128], index: 1, kind: input, shape index: {}]
  %s2 = inlined_call_operand.hbm [shape: f32[16,128], index: 2, kind: input, shape index: {}]
  %s3 = inlined_call_operand.hbm [shape: f32[8,8,128], index: 3, kind: output, shape index: {}]
  %s4 = sld [smem:[#allocation0]]
  $region57: #{tpu_custom_call.1} parent=0
    _
  %s6 = ssub.s32 1, %s4
  %s7 = scalar_select 0, %s6, %s4
  $region1: #{tpu_custom_call.1} parent=0
    #allocation3 [shape = 'u8[32768]{0}', space=vmem, size = 0x8000, scoped, tag = 'input window, operand 0']
    #allocation4 [shape = 's32[2]{0}', space=sflag, size = 0x8, scoped, tag = 'scoped memory for tpu_custom_call.1']
    #allocation5 [shape = 's32[2]{0}', space=sflag, size = 0x8, scoped, tag = 'scoped memory for tpu_custom_call.1']
    #allocation6 [shape = 'u8[131072]{0}', space=vmem, size = 0x20000, scoped, tag = 'input window, operand 1, single buffered']
    #allocation7 [shape = 's32[1]{0}', space=sflag, size = 0x4, scoped, tag = 'scoped memory for tpu_custom_call.1']
    #allocation8 [shape = 'u8[8192]{0}', space=vmem, size = 0x2000, scoped, tag = 'input window, operand 2, single buffered']
    #allocation9 [shape = 'u8[32768]{0}', space=vmem, size = 0x8000, scoped, tag = 'output window, operand 0']
    %8 = vsyncpa [#allocation4], 0
    %s9 = scalar_lea.sflag [#allocation4], 1
    %10 = vsyncpa %s9, 0
    %11 = vsyncpa [#allocation7], 0
    %12 = vsyncpa [#allocation5], 0
    %s13 = scalar_lea.sflag [#allocation5], 1
    %14 = vsyncpa %s13, 0
    loop: start=0, step=1, limit=4
    $region2: #{tpu_custom_call.1} parent=1 // loop_pre_header
      _
    $region3: #{tpu_custom_call.1} parent=1 // loop_header
      %s16 = sphi 0, %s20
      %p17 = scmp.ge.s32.totalorder %s16, 4
      %s26 = sphi 0, %s28
      %s29 = sphi 0, %s26
      %s30 = sphi 0, %s29
      %s46 = sphi 0, %s30
      %s50 = sphi 0, %s50
      %s52 = sphi 0, %s50
      %s53 = sphi 0, %s52
      %s67 = sphi 0, %s53
      %s71 = sphi 0, %s71
      %s73 = sphi 0, %s71
      %s74 = sphi 0, %s73
      %s88 = sphi 0, %s74
      %s94 = sphi 0, %s96
      %s97 = sphi 0, %s94
      %s98 = sphi 0, %s97
      %s114 = sphi 0, %s98
    $region4: #{tpu_custom_call.1} parent=1 // loop_header_branch
      %19 = sbr.rel (%p17) target = $region8
    $region5: #{tpu_custom_call.1} parent=1 // loop_body
      %s21 = ssub.s32 %s16, 1
      %s22 = ssub.s32 %s16, 2
      %s23 = sadd.s32 %s16, 1
      %s24 = ssub.s32 %s16, %s23
      %p25 = scmp.eq.s32.totalorder %s24, 0
      %s27 = sadd.s32 %s26, 1
      %s28 = scalar_select %p25, %s26, %s27
      %p31 = pneg %p25
      %p32 = scmp.eq.s32.totalorder %s16, 1
      %p33 = por %p31, %p32
      %p34 = scmp.ne.s32.totalorder %s26, %s29
      %p35 = scmp.eq.s32.totalorder %s16, 0
      %p36 = por %p34, %p35
      %p37 = scmp.ne.s32.totalorder %s26, %s29
      %p38 = scmp.eq.s32.totalorder %s21, 1
      %p39 = por %p37, %p38
      %p40 = scmp.ne.s32.totalorder %s29, %s30
      %p41 = scmp.eq.s32.totalorder %s21, 0
      %p42 = por %p40, %p41
      %p43 = scmp.ne.s32.totalorder %s29, %s30
      %p44 = scmp.eq.s32.totalorder %s22, 1
      %p45 = por %p43, %p44
      %p47 = scmp.ne.s32.totalorder %s30, %s46
      %p48 = scmp.eq.s32.totalorder %s22, 0
      %p49 = por %p47, %p48
      %s51 = sadd.s32 %s50, 1
      %p54 = scmp.eq.s32.totalorder %s16, 1
      %p55 = scmp.ne.s32.totalorder %s50, %s52
      %p56 = scmp.eq.s32.totalorder %s16, 0
      %p57 = por %p55, %p56
      %p58 = scmp.ne.s32.totalorder %s50, %s52
      %p59 = scmp.eq.s32.totalorder %s21, 1
      %p60 = por %p58, %p59
      %p61 = scmp.ne.s32.totalorder %s52, %s53
      %p62 = scmp.eq.s32.totalorder %s21, 0
      %p63 = por %p61, %p62
      %p64 = scmp.ne.s32.totalorder %s52, %s53
      %p65 = scmp.eq.s32.totalorder %s22, 1
      %p66 = por %p64, %p65
      %p68 = scmp.ne.s32.totalorder %s53, %s67
      %p69 = scmp.eq.s32.totalorder %s22, 0
      %p70 = por %p68, %p69
      %s72 = sadd.s32 %s71, 1
      %p75 = scmp.eq.s32.totalorder %s16, 1
      %p76 = scmp.ne.s32.totalorder %s71, %s73
      %p77 = scmp.eq.s32.totalorder %s16, 0
      %p78 = por %p76, %p77
      %p79 = scmp.ne.s32.totalorder %s71, %s73
      %p80 = scmp.eq.s32.totalorder %s21, 1
      %p81 = por %p79, %p80
      %p82 = scmp.ne.s32.totalorder %s73, %s74
      %p83 = scmp.eq.s32.totalorder %s21, 0
      %p84 = por %p82, %p83
      %p85 = scmp.ne.s32.totalorder %s73, %s74
      %p86 = scmp.eq.s32.totalorder %s22, 1
      %p87 = por %p85, %p86
      %p89 = scmp.ne.s32.totalorder %s74, %s88
      %p90 = scmp.eq.s32.totalorder %s22, 0
      %p91 = por %p89, %p90
      %s92 = ssub.s32 %s16, %s23
      %p93 = scmp.eq.s32.totalorder %s92, 0
      %s95 = sadd.s32 %s94, 1
      %s96 = scalar_select %p93, %s94, %s95
      %p99 = pneg %p93
      %p100 = scmp.eq.s32.totalorder %s16, 1
      %p101 = por %p99, %p100
      %p102 = scmp.ne.s32.totalorder %s94, %s97
      %p103 = scmp.eq.s32.totalorder %s16, 0
      %p104 = por %p102, %p103
      %p105 = scmp.ne.s32.totalorder %s94, %s97
      %p106 = scmp.eq.s32.totalorder %s21, 1
      %p107 = por %p105, %p106
      %p108 = scmp.ne.s32.totalorder %s97, %s98
      %p109 = scmp.eq.s32.totalorder %s21, 0
      %p110 = por %p108, %p109
      %p111 = scmp.ne.s32.totalorder %s97, %s98
      %p112 = scmp.eq.s32.totalorder %s22, 1
      %p113 = por %p111, %p112
      %p115 = scmp.ne.s32.totalorder %s98, %s114
      %p116 = scmp.eq.s32.totalorder %s22, 0
      %p117 = por %p115, %p116
      %p118 = scmp.le.s32.totalorder 1, %s16
      %p119 = scmp.lt.s32.totalorder %s16, 3
      %p120 = pnand %p118, %p119
      %p121 = pneg %p120
      // Predicated region
      $region9: #{tpu_custom_call.1} parent=5 // pred_check
        _
      $region10: #{tpu_custom_call.1} parent=5 // pred_check_branch
        %123 = sbr.rel (%p120) target = $region12
      $region11: #{tpu_custom_call.1} parent=5 // pred_region
        %s124 = ssub.s32 %s16, 1
        // Predicated region
        $region13: #{tpu_custom_call.1} parent=11 // pred_check
          %p125 = pneg %p63
        $region14: #{tpu_custom_call.1} parent=11 // pred_check_branch
          %127 = sbr.rel (%p125) target = $region16
        $region15: #{tpu_custom_call.1} parent=11 // pred_region
          %s129 = ssub.s32 4096, 4096
          %130 = vsyncadd [#allocation7], %s129
          %s131 = sshll.u32 [#allocation6], 4
          %s132 = int_to_ptr.vmem [resolvable:$true] %s131
          %137 = dma.hbm_to_vmem [thread:$0]  %s1, 4096, %s132, [#allocation7], 64, 64, 4
        $region16: #{tpu_custom_call.1} parent=11 // pred_fallthru
          _
        // Predicated region
        $region17: #{tpu_custom_call.1} parent=11 // pred_check
          %p138 = pneg %p84
        $region18: #{tpu_custom_call.1} parent=11 // pred_check_branch
          %140 = sbr.rel (%p138) target = $region20
        $region19: #{tpu_custom_call.1} parent=11 // pred_region
          %s142 = ssub.s32 256, 256
          %143 = vsyncadd [#allocation7], %s142
          %s144 = sshll.u32 [#allocation8], 4
          %s145 = int_to_ptr.vmem [resolvable:$true] %s144
          %150 = dma.hbm_to_vmem [thread:$0]  %s2, 256, %s145, [#allocation7], 128, 128, 8
        $region20: #{tpu_custom_call.1} parent=11 // pred_fallthru
          _
      $region12: #{tpu_custom_call.1} parent=5 // pred_fallthru
        _
      %p151 = scmp.lt.s32.totalorder %s16, 2
      // Predicated region
      $region21: #{tpu_custom_call.1} parent=5 // pred_check
        %p152 = pneg %p151
      $region22: #{tpu_custom_call.1} parent=5 // pred_check_branch
        %154 = sbr.rel (%p152) target = $region24
      $region23: #{tpu_custom_call.1} parent=5 // pred_region
        // Predicated region
        $region25: #{tpu_custom_call.1} parent=23 // pred_check
          %p155 = pneg %p36
        $region26: #{tpu_custom_call.1} parent=23 // pred_check_branch
          %157 = sbr.rel (%p155) target = $region28
        $region27: #{tpu_custom_call.1} parent=23 // pred_region
          %s158 = sand.u32 %s26, 1
          %s159 = scalar_lea.sflag [#allocation4], %s158
          %s160 = sand.u32 %s26, 1
          %s161 = smul.addr %s160, 32
          %s162 = scalar_lea.vmem [#allocation3], %s161
          %s163 = smul.u32 4, %s16
          %s165 = ssub.s32 512, 512
          %166 = vsyncadd %s159, %s165
          %s167 = smul.addr %s163, 128
          %s168 = scalar_lea.hbm %s0, %s167
          %s169 = sshll.u32 %s162, 4
          %s170 = int_to_ptr.vmem [resolvable:$true] %s169
          %175 = dma.hbm_to_vmem [thread:$0]  %s168, 512, %s170, %s159, 128, 128, 8
        $region28: #{tpu_custom_call.1} parent=23 // pred_fallthru
          _
      $region24: #{tpu_custom_call.1} parent=5 // pred_fallthru
        _
      %p176 = scmp.le.s32.totalorder 1, %s16
      %p177 = scmp.lt.s32.totalorder %s16, 3
      %p178 = pnand %p176, %p177
      %p179 = pneg %p178
      // Predicated region
      $region29: #{tpu_custom_call.1} parent=5 // pred_check
        _
      $region30: #{tpu_custom_call.1} parent=5 // pred_check_branch
        %181 = sbr.rel (%p178) target = $region32
      $region31: #{tpu_custom_call.1} parent=5 // pred_region
        %s182 = ssub.s32 %s16, 1
        %s183 = sand.u32 %s29, 1
        %s184 = scalar_lea.sflag [#allocation4], %s183
        %s185 = sand.u32 %s29, 1
        %s186 = smul.addr %s185, 32
        %s187 = scalar_lea.vmem [#allocation3], %s186
        // Predicated region
        $region33: #{tpu_custom_call.1} parent=31 // pred_check
          %p188 = pneg %p42
        $region34: #{tpu_custom_call.1} parent=31 // pred_check_branch
          %190 = sbr.rel (%p188) target = $region36
        $region35: #{tpu_custom_call.1} parent=31 // pred_region
          %191 = dma.done %s184, 512
        $region36: #{tpu_custom_call.1} parent=31 // pred_fallthru
          _
        // Predicated region
        $region37: #{tpu_custom_call.1} parent=31 // pred_check
          %p192 = pneg %p63
        $region38: #{tpu_custom_call.1} parent=31 // pred_check_branch
          %194 = sbr.rel (%p192) target = $region40
        $region39: #{tpu_custom_call.1} parent=31 // pred_region
          %195 = dma.done [#allocation7], 4096
        $region40: #{tpu_custom_call.1} parent=31 // pred_fallthru
          _
        // Predicated region
        $region41: #{tpu_custom_call.1} parent=31 // pred_check
          %p196 = pneg %p84
        $region42: #{tpu_custom_call.1} parent=31 // pred_check_branch
          %198 = sbr.rel (%p196) target = $region44
        $region43: #{tpu_custom_call.1} parent=31 // pred_region
          %199 = dma.done [#allocation7], 256
        $region44: #{tpu_custom_call.1} parent=31 // pred_fallthru
          _
        %s200 = sand.u32 %s29, 1
        %s201 = scalar_lea.sflag [#allocation4], %s200
        %s202 = sand.u32 %s29, 1
        %s203 = smul.addr %s202, 32
        %s204 = scalar_lea.vmem [#allocation3], %s203
        %p205 = pneg %p42
        %p206 = pneg %p39
        %p207 = pneg %p63
        %p208 = pneg %p60
        %p209 = pneg %p84
        %p210 = pneg %p81
        %p211 = pneg %p110
        %p212 = pneg %p107
        %s213 = sand.u32 %s97, 1
        %s214 = scalar_lea.sflag [#allocation5], %s213
        %s215 = sand.u32 %s97, 1
        %s216 = smul.addr %s215, 32
        %s217 = scalar_lea.vmem [#allocation9], %s216
        %s218 = smul.u32 4, %s21
        %s219 = smul.u32 4, %s21
        %221 = vst [vmem:[#allocation2] sm:$0xff] 0.0
        %222 = vst [vmem:[#allocation2 + $0x8] sm:$0xff] 0.0
        %223 = vst [vmem:[#allocation2 + $0x10] sm:$0xff] 0.0
        %224 = vst [vmem:[#allocation2 + $0x18] sm:$0xff] 0.0
        %v225 = vld [vmem:[%s187] sm:$0xff]
        %v226 = vld [vmem:[%s187 + $0x8] sm:$0xff]
        %v227 = vld [vmem:[%s187 + $0x10] sm:$0xff]
        %v228 = vld [vmem:[%s187 + $0x18] sm:$0xff]
        %vm229 = vcmask 130048
        %230 = vst.msk [vmem:[#allocation2] sm:$0xff] %vm229, %v225
        %231 = vst.msk [vmem:[#allocation2 + $0x8] sm:$0xff] %vm229, %v226
        %232 = vst.msk [vmem:[#allocation2 + $0x10] sm:$0xff] %vm229, %v227
        %233 = vst.msk [vmem:[#allocation2 + $0x18] sm:$0xff] %vm229, %v228
        %v234 = vld [vmem:[#allocation8] sm:$0xff]
        %v235 = vld [vmem:[#allocation8 + $0x8] sm:$0xff]
        %v236 = vld [vmem:[#allocation2] sm:$0xff]
        %v237 = vld [vmem:[#allocation2 + $0x8] sm:$0xff]
        %v238 = vld [vmem:[#allocation2 + $0x10] sm:$0xff]
        %v239 = vld [vmem:[#allocation2 + $0x18] sm:$0xff]
        %v240 = vrot.slane %v236, 4
        %v241 = vadd.f32 %v236, %v240
        %v242 = vrot.slane %v241, 2
        %v243 = vadd.f32 %v241, %v242
        %v244 = vrot.slane %v243, 1
        %v245 = vadd.f32 %v243, %v244
        %v246 = vrot.slane %v237, 4
        %v247 = vadd.f32 %v237, %v246
        %v248 = vrot.slane %v247, 2
        %v249 = vadd.f32 %v247, %v248
        %v250 = vrot.slane %v249, 1
        %v251 = vadd.f32 %v249, %v250
        %v252 = vrot.slane %v238, 4
        %v253 = vadd.f32 %v238, %v252
        %v254 = vrot.slane %v253, 2
        %v255 = vadd.f32 %v253, %v254
        %v256 = vrot.slane %v255, 1
        %v257 = vadd.f32 %v255, %v256
        %v258 = vrot.slane %v239, 4
        %v259 = vadd.f32 %v239, %v258
        %v260 = vrot.slane %v259, 2
        %v261 = vadd.f32 %v259, %v260
        %v262 = vrot.slane %v261, 1
        %v263 = vadd.f32 %v261, %v262
        %v264 = vrcp.pop 8.0
        %v265 = vmul.f32 %v245, %v264
        %v266 = vmul.f32 %v251, %v264
        %v267 = vmul.f32 %v257, %v264
        %v268 = vmul.f32 %v263, %v264
        %v269 = vmul.f32 %v236, %v236
        %v270 = vmul.f32 %v237, %v237
        %v271 = vmul.f32 %v238, %v238
        %v272 = vmul.f32 %v239, %v239
        %v273 = vrot.slane %v269, 4
        %v274 = vadd.f32 %v269, %v273
        %v275 = vrot.slane %v274, 2
        %v276 = vadd.f32 %v274, %v275
        %v277 = vrot.slane %v276, 1
        %v278 = vadd.f32 %v276, %v277
        %v279 = vrot.slane %v270, 4
        %v280 = vadd.f32 %v270, %v279
        %v281 = vrot.slane %v280, 2
        %v282 = vadd.f32 %v280, %v281
        %v283 = vrot.slane %v282, 1
        %v284 = vadd.f32 %v282, %v283
        %v285 = vrot.slane %v271, 4
        %v286 = vadd.f32 %v271, %v285
        %v287 = vrot.slane %v286, 2
        %v288 = vadd.f32 %v286, %v287
        %v289 = vrot.slane %v288, 1
        %v290 = vadd.f32 %v288, %v289
        %v291 = vrot.slane %v272, 4
        %v292 = vadd.f32 %v272, %v291
        %v293 = vrot.slane %v292, 2
        %v294 = vadd.f32 %v292, %v293
        %v295 = vrot.slane %v294, 1
        %v296 = vadd.f32 %v294, %v295
        %v297 = vmul.f32 %v278, %v264
        %v298 = vmul.f32 %v284, %v264
        %v299 = vmul.f32 %v290, %v264
        %v300 = vmul.f32 %v296, %v264
        %v301 = vmul.f32 %v265, %v265
        %v302 = vmul.f32 %v266, %v266
        %v303 = vmul.f32 %v267, %v267
        %v304 = vmul.f32 %v268, %v268
        %v305 = vsub.f32 %v297, %v301
        %v306 = vsub.f32 %v298, %v302
        %v307 = vsub.f32 %v299, %v303
        %v308 = vsub.f32 %v300, %v304
        %v309 = vmax.f32 %v305, 0.0
        %v310 = vmax.f32 %v306, 0.0
        %v311 = vmax.f32 %v307, 0.0
        %v312 = vmax.f32 %v308, 0.0
        %v313 = vsub.f32 %v236, %v265
        %v314 = vsub.f32 %v237, %v266
        %v315 = vsub.f32 %v238, %v267
        %v316 = vsub.f32 %v239, %v268
        %v317 = vadd.f32 %v309, 1e-05
        %v318 = vadd.f32 %v310, 1e-05
        %v319 = vadd.f32 %v311, 1e-05
        %v320 = vadd.f32 %v312, 1e-05
        %v321 = vrsqrt.pop %v317
        %v322 = vrsqrt.pop %v318
        %v323 = vrsqrt.pop %v319
        %v324 = vrsqrt.pop %v320
        %v325 = vmul.f32 %v313, %v321
        %v326 = vmul.f32 %v314, %v322
        %v327 = vmul.f32 %v315, %v323
        %v328 = vmul.f32 %v316, %v324
        %v329 = vlaneseq
        %v330 = vshrl.u32 %v329, 7
        %v331 = vsub.s32 0, %v330
        %v332 = vrot.slane %v234, %v331
        %v333 = vmul.f32 %v325, %v332
        %v334 = vmul.f32 %v326, %v332
        %v335 = vmul.f32 %v327, %v332
        %v336 = vmul.f32 %v328, %v332
        %v337 = vlaneseq
        %v338 = vshrl.u32 %v337, 7
        %v339 = vsub.s32 1, %v338
        %v340 = vrot.slane %v234, %v339
        %v341 = vadd.f32 %v333, %v340
        %v342 = vadd.f32 %v334, %v340
        %v343 = vadd.f32 %v335, %v340
        %v344 = vadd.f32 %v336, %v340
        %v345 = vpack.c.bf16 %v342, %v341
        %v346 = vpack.c.bf16 %v344, %v343
        %v347 = vld [vmem:[#allocation6] sm:$0xf]
        %v348 = vld [vmem:[#allocation6 + $0x4] sm:$0xf]
        %v349 = vld [vmem:[#allocation6 + $0x8] sm:$0xf]
        %v350 = vld [vmem:[#allocation6 + $0xc] sm:$0xf]
        %v351 = vld [vmem:[#allocation6 + $0x10] sm:$0xf]
        %v352 = vld [vmem:[#allocation6 + $0x14] sm:$0xf]
        %v353 = vld [vmem:[#allocation6 + $0x18] sm:$0xf]
        %v354 = vld [vmem:[#allocation6 + $0x1c] sm:$0xf]
        %v355 = vld [vmem:[#allocation6 + $0x20] sm:$0xf]
        %v356 = vld [vmem:[#allocation6 + $0x24] sm:$0xf]
        %v357 = vld [vmem:[#allocation6 + $0x28] sm:$0xf]
        %v358 = vld [vmem:[#allocation6 + $0x2c] sm:$0xf]
        %v359 = vld [vmem:[#allocation6 + $0x30] sm:$0xf]
        %v360 = vld [vmem:[#allocation6 + $0x34] sm:$0xf]
        %v361 = vld [vmem:[#allocation6 + $0x38] sm:$0xf]
        %v362 = vld [vmem:[#allocation6 + $0x3c] sm:$0xf]
        %v379 = vunpack.c.l.b16 %v347
        %v380 = vunpack.c.l.b16 %v348
        %v381 = vunpack.c.l.b16 %v349
        %v382 = vunpack.c.l.b16 %v350
        %v383 = vunpack.c.l.b16 %v351
        %v384 = vunpack.c.l.b16 %v352
        %v385 = vunpack.c.l.b16 %v353
        %v386 = vunpack.c.l.b16 %v354
        %v387 = vunpack.c.l.b16 %v355
        %v388 = vunpack.c.l.b16 %v356
        %v389 = vunpack.c.l.b16 %v357
        %v390 = vunpack.c.l.b16 %v358
        %v391 = vunpack.c.l.b16 %v359
        %v392 = vunpack.c.l.b16 %v360
        %v393 = vunpack.c.l.b16 %v361
        %v394 = vunpack.c.l.b16 %v362
        %v395 = vpack.c.b16 %v380, %v379
        %v396 = vpack.c.b16 %v382, %v381
        %v397 = vpack.c.b16 %v384, %v383
        %v398 = vpack.c.b16 %v386, %v385
        %v399 = vpack.c.b16 %v388, %v387
        %v400 = vpack.c.b16 %v390, %v389
        %v401 = vpack.c.b16 %v392, %v391
        %v402 = vpack.c.b16 %v394, %v393
        %411 = vmatprep.subr.bf16.mxu0 0
        %412 = vmatpush1.bf16.msra.mxu0 %v395
        %413 = vmatprep.subr.bf16.mxu0 0
        %414 = vmatpush1.bf16.msra.mxu0 %v396
        %415 = vmatprep.subr.bf16.mxu0 0
        %416 = vmatpush1.bf16.msra.mxu0 %v397
        %417 = vmatprep.subr.bf16.mxu0 0
        %418 = vmatpush1.bf16.msra.mxu0 %v398
        %419 = vmatprep.subr.bf16.mxu0 0
        %420 = vmatpush1.bf16.msra.mxu0 %v399
        %421 = vmatprep.subr.bf16.mxu0 0
        %422 = vmatpush1.bf16.msra.mxu0 %v400
        %423 = vmatprep.subr.bf16.mxu0 0
        %424 = vmatpush1.bf16.msra.mxu0 %v401
        %425 = vmatprep.subr.bf16.mxu0 0
        %426 = vmatpush1.bf16.msra.mxu0 %v402
        %427 = vmatprep.subr.bf16.mxu0 0
        %428 = vmatpush1.bf16.msra.mxu0 0
        %429 = vmatprep.subr.bf16.mxu0 0
        %430 = vmatpush1.bf16.msra.mxu0 0
        %431 = vmatprep.subr.bf16.mxu0 0
        %432 = vmatpush1.bf16.msra.mxu0 0
        %433 = vmatprep.subr.bf16.mxu0 0
        %434 = vmatpush1.bf16.msra.mxu0 0
        %435 = vmatprep.subr.bf16.mxu0 0
        %436 = vmatpush1.bf16.msra.mxu0 0
        %437 = vmatprep.subr.bf16.mxu0 0
        %438 = vmatpush1.bf16.msra.mxu0 0
        %439 = vmatprep.subr.bf16.mxu0 0
        %440 = vmatpush1.bf16.msra.mxu0 0
        %441 = vmatprep.subr.bf16.mxu0 0
        %442 = vmatpush1.bf16.msra.mxu0 0
        %443 = vmatprep.mubr.bf16.mxu0 0
        %444 = vmatmul.mubr.bf16.gmra.mrb[0].mxu0 %v345
        %v445 = vpop.f32.mrb[0].mxu0
        %v446 = vadd.f32 0.0, %v445
        %v447 = vpop.f32.mrb[0].mxu0
        %v448 = vpop.f32.mrb[0].mxu0
        %v449 = vadd.f32 0.0, %v448
        %v450 = vpop.f32.mrb[0].mxu0
        %451 = vmatprep.mubr.bf16.mxu0 0
        %452 = vmatmul.mubr.bf16.gmra.mrb[0].mxu0 %v346
        %v453 = vpop.f32.mrb[0].mxu0
        %v454 = vadd.f32 0.0, %v453
        %v455 = vpop.f32.mrb[0].mxu0
        %v456 = vpop.f32.mrb[0].mxu0
        %v457 = vadd.f32 0.0, %v456
        %v458 = vpop.f32.mrb[0].mxu0
        %459 = vdwg.mxu0
        %v460 = vrot.slane %v446, 4
        %v461 = vadd.f32 %v446, %v460
        %v462 = vrot.slane %v461, 2
        %v463 = vadd.f32 %v461, %v462
        %v464 = vrot.slane %v463, 1
        %v465 = vadd.f32 %v463, %v464
        %v466 = vrot.slane %v449, 4
        %v467 = vadd.f32 %v449, %v466
        %v468 = vrot.slane %v467, 2
        %v469 = vadd.f32 %v467, %v468
        %v470 = vrot.slane %v469, 1
        %v471 = vadd.f32 %v469, %v470
        %v472 = vrot.slane %v454, 4
        %v473 = vadd.f32 %v454, %v472
        %v474 = vrot.slane %v473, 2
        %v475 = vadd.f32 %v473, %v474
        %v476 = vrot.slane %v475, 1
        %v477 = vadd.f32 %v475, %v476
        %v478 = vrot.slane %v457, 4
        %v479 = vadd.f32 %v457, %v478
        %v480 = vrot.slane %v479, 2
        %v481 = vadd.f32 %v479, %v480
        %v482 = vrot.slane %v481, 1
        %v483 = vadd.f32 %v481, %v482
        %v484 = vmul.f32 %v465, %v264
        %v485 = vmul.f32 %v471, %v264
        %v486 = vmul.f32 %v477, %v264
        %v487 = vmul.f32 %v483, %v264
        %v488 = vmul.f32 %v446, %v446
        %v489 = vmul.f32 %v449, %v449
        %v490 = vmul.f32 %v454, %v454
        %v491 = vmul.f32 %v457, %v457
        %v492 = vrot.slane %v488, 4
        %v493 = vadd.f32 %v488, %v492
        %v494 = vrot.slane %v493, 2
        %v495 = vadd.f32 %v493, %v494
        %v496 = vrot.slane %v495, 1
        %v497 = vadd.f32 %v495, %v496
        %v498 = vrot.slane %v489, 4
        %v499 = vadd.f32 %v489, %v498
        %v500 = vrot.slane %v499, 2
        %v501 = vadd.f32 %v499, %v500
        %v502 = vrot.slane %v501, 1
        %v503 = vadd.f32 %v501, %v502
        %v504 = vrot.slane %v490, 4
        %v505 = vadd.f32 %v490, %v504
        %v506 = vrot.slane %v505, 2
        %v507 = vadd.f32 %v505, %v506
        %v508 = vrot.slane %v507, 1
        %v509 = vadd.f32 %v507, %v508
        %v510 = vrot.slane %v491, 4
        %v511 = vadd.f32 %v491, %v510
        %v512 = vrot.slane %v511, 2
        %v513 = vadd.f32 %v511, %v512
        %v514 = vrot.slane %v513, 1
        %v515 = vadd.f32 %v513, %v514
        %v516 = vmul.f32 %v497, %v264
        %v517 = vmul.f32 %v503, %v264
        %v518 = vmul.f32 %v509, %v264
        %v519 = vmul.f32 %v515, %v264
        %v520 = vmul.f32 %v484, %v484
        %v521 = vmul.f32 %v485, %v485
        %v522 = vmul.f32 %v486, %v486
        %v523 = vmul.f32 %v487, %v487
        %v524 = vsub.f32 %v516, %v520
        %v525 = vsub.f32 %v517, %v521
        %v526 = vsub.f32 %v518, %v522
        %v527 = vsub.f32 %v519, %v523
        %v528 = vmax.f32 %v524, 0.0
        %v529 = vmax.f32 %v525, 0.0
        %v530 = vmax.f32 %v526, 0.0
        %v531 = vmax.f32 %v527, 0.0
        %v532 = vsub.f32 %v446, %v484
        %v533 = vsub.f32 %v449, %v485
        %v534 = vsub.f32 %v454, %v486
        %v535 = vsub.f32 %v457, %v487
        %v536 = vadd.f32 %v528, 1e-05
        %v537 = vadd.f32 %v529, 1e-05
        %v538 = vadd.f32 %v530, 1e-05
        %v539 = vadd.f32 %v531, 1e-05
        %v540 = vrsqrt.pop %v536
        %v541 = vrsqrt.pop %v537
        %v542 = vrsqrt.pop %v538
        %v543 = vrsqrt.pop %v539
        %v544 = vmul.f32 %v532, %v540
        %v545 = vmul.f32 %v533, %v541
        %v546 = vmul.f32 %v534, %v542
        %v547 = vmul.f32 %v535, %v543
        %v548 = vlaneseq
        %v549 = vshrl.u32 %v548, 7
        %v550 = vsub.s32 2, %v549
        %v551 = vrot.slane %v234, %v550
        %v552 = vmul.f32 %v544, %v551
        %v553 = vmul.f32 %v545, %v551
        %v554 = vmul.f32 %v546, %v551
        %v555 = vmul.f32 %v547, %v551
        %v556 = vlaneseq
        %v557 = vshrl.u32 %v556, 7
        %v558 = vsub.s32 3, %v557
        %v559 = vrot.slane %v234, %v558
        %v560 = vadd.f32 %v552, %v559
        %v561 = vadd.f32 %v553, %v559
        %v562 = vadd.f32 %v554, %v559
        %v563 = vadd.f32 %v555, %v559
        %v564 = vmax.f32 %v560, 0.0
        %v565 = vmax.f32 %v561, 0.0
        %v566 = vmax.f32 %v562, 0.0
        %v567 = vmax.f32 %v563, 0.0
        %v568 = vpack.c.bf16 %v565, %v564
        %v569 = vpack.c.bf16 %v567, %v566
        %s570 = scalar_lea.vmem [#allocation6], 64
        %v571 = vld [vmem:[%s570] sm:$0xf]
        %v572 = vld [vmem:[%s570 + $0x4] sm:$0xf]
        %v573 = vld [vmem:[%s570 + $0x8] sm:$0xf]
        %v574 = vld [vmem:[%s570 + $0xc] sm:$0xf]
        %v575 = vld [vmem:[%s570 + $0x10] sm:$0xf]
        %v576 = vld [vmem:[%s570 + $0x14] sm:$0xf]
        %v577 = vld [vmem:[%s570 + $0x18] sm:$0xf]
        %v578 = vld [vmem:[%s570 + $0x1c] sm:$0xf]
        %v579 = vld [vmem:[%s570 + $0x20] sm:$0xf]
        %v580 = vld [vmem:[%s570 + $0x24] sm:$0xf]
        %v581 = vld [vmem:[%s570 + $0x28] sm:$0xf]
        %v582 = vld [vmem:[%s570 + $0x2c] sm:$0xf]
        %v583 = vld [vmem:[%s570 + $0x30] sm:$0xf]
        %v584 = vld [vmem:[%s570 + $0x34] sm:$0xf]
        %v585 = vld [vmem:[%s570 + $0x38] sm:$0xf]
        %v586 = vld [vmem:[%s570 + $0x3c] sm:$0xf]
        %v603 = vunpack.c.l.b16 %v571
        %v604 = vunpack.c.l.b16 %v572
        %v605 = vunpack.c.l.b16 %v573
        %v606 = vunpack.c.l.b16 %v574
        %v607 = vunpack.c.l.b16 %v575
        %v608 = vunpack.c.l.b16 %v576
        %v609 = vunpack.c.l.b16 %v577
        %v610 = vunpack.c.l.b16 %v578
        %v611 = vunpack.c.l.b16 %v579
        %v612 = vunpack.c.l.b16 %v580
        %v613 = vunpack.c.l.b16 %v581
        %v614 = vunpack.c.l.b16 %v582
        %v615 = vunpack.c.l.b16 %v583
        %v616 = vunpack.c.l.b16 %v584
        %v617 = vunpack.c.l.b16 %v585
        %v618 = vunpack.c.l.b16 %v586
        %v619 = vpack.c.b16 %v604, %v603
        %v620 = vpack.c.b16 %v606, %v605
        %v621 = vpack.c.b16 %v608, %v607
        %v622 = vpack.c.b16 %v610, %v609
        %v623 = vpack.c.b16 %v612, %v611
        %v624 = vpack.c.b16 %v614, %v613
        %v625 = vpack.c.b16 %v616, %v615
        %v626 = vpack.c.b16 %v618, %v617
        %635 = vmatprep.subr.bf16.mxu0 0
        %636 = vmatpush1.bf16.msra.mxu0 %v619
        %637 = vmatprep.subr.bf16.mxu0 0
        %638 = vmatpush1.bf16.msra.mxu0 %v620
        %639 = vmatprep.subr.bf16.mxu0 0
        %640 = vmatpush1.bf16.msra.mxu0 %v621
        %641 = vmatprep.subr.bf16.mxu0 0
        %642 = vmatpush1.bf16.msra.mxu0 %v622
        %643 = vmatprep.subr.bf16.mxu0 0
        %644 = vmatpush1.bf16.msra.mxu0 %v623
        %645 = vmatprep.subr.bf16.mxu0 0
        %646 = vmatpush1.bf16.msra.mxu0 %v624
        %647 = vmatprep.subr.bf16.mxu0 0
        %648 = vmatpush1.bf16.msra.mxu0 %v625
        %649 = vmatprep.subr.bf16.mxu0 0
        %650 = vmatpush1.bf16.msra.mxu0 %v626
        %651 = vmatprep.subr.bf16.mxu0 0
        %652 = vmatpush1.bf16.msra.mxu0 0
        %653 = vmatprep.subr.bf16.mxu0 0
        %654 = vmatpush1.bf16.msra.mxu0 0
        %655 = vmatprep.subr.bf16.mxu0 0
        %656 = vmatpush1.bf16.msra.mxu0 0
        %657 = vmatprep.subr.bf16.mxu0 0
        %658 = vmatpush1.bf16.msra.mxu0 0
        %659 = vmatprep.subr.bf16.mxu0 0
        %660 = vmatpush1.bf16.msra.mxu0 0
        %661 = vmatprep.subr.bf16.mxu0 0
        %662 = vmatpush1.bf16.msra.mxu0 0
        %663 = vmatprep.subr.bf16.mxu0 0
        %664 = vmatpush1.bf16.msra.mxu0 0
        %665 = vmatprep.subr.bf16.mxu0 0
        %666 = vmatpush1.bf16.msra.mxu0 0
        %667 = vmatprep.mubr.bf16.mxu0 0
        %668 = vmatmul.mubr.bf16.gmra.mrb[0].mxu0 %v568
        %v669 = vpop.f32.mrb[0].mxu0
        %v670 = vadd.f32 0.0, %v669
        %v671 = vpop.f32.mrb[0].mxu0
        %v672 = vpop.f32.mrb[0].mxu0
        %v673 = vadd.f32 0.0, %v672
        %v674 = vpop.f32.mrb[0].mxu0
        %675 = vmatprep.mubr.bf16.mxu0 0
        %676 = vmatmul.mubr.bf16.gmra.mrb[0].mxu0 %v569
        %v677 = vpop.f32.mrb[0].mxu0
        %v678 = vadd.f32 0.0, %v677
        %v679 = vpop.f32.mrb[0].mxu0
        %v680 = vpop.f32.mrb[0].mxu0
        %v681 = vadd.f32 0.0, %v680
        %v682 = vpop.f32.mrb[0].mxu0
        %683 = vdwg.mxu0
        %v684 = vrot.slane %v670, 4
        %v685 = vadd.f32 %v670, %v684
        %v686 = vrot.slane %v685, 2
        %v687 = vadd.f32 %v685, %v686
        %v688 = vrot.slane %v687, 1
        %v689 = vadd.f32 %v687, %v688
        %v690 = vrot.slane %v673, 4
        %v691 = vadd.f32 %v673, %v690
        %v692 = vrot.slane %v691, 2
        %v693 = vadd.f32 %v691, %v692
        %v694 = vrot.slane %v693, 1
        %v695 = vadd.f32 %v693, %v694
        %v696 = vrot.slane %v678, 4
        %v697 = vadd.f32 %v678, %v696
        %v698 = vrot.slane %v697, 2
        %v699 = vadd.f32 %v697, %v698
        %v700 = vrot.slane %v699, 1
        %v701 = vadd.f32 %v699, %v700
        %v702 = vrot.slane %v681, 4
        %v703 = vadd.f32 %v681, %v702
        %v704 = vrot.slane %v703, 2
        %v705 = vadd.f32 %v703, %v704
        %v706 = vrot.slane %v705, 1
        %v707 = vadd.f32 %v705, %v706
        %v708 = vmul.f32 %v689, %v264
        %v709 = vmul.f32 %v695, %v264
        %v710 = vmul.f32 %v701, %v264
        %v711 = vmul.f32 %v707, %v264
        %v712 = vmul.f32 %v670, %v670
        %v713 = vmul.f32 %v673, %v673
        %v714 = vmul.f32 %v678, %v678
        %v715 = vmul.f32 %v681, %v681
        %v716 = vrot.slane %v712, 4
        %v717 = vadd.f32 %v712, %v716
        %v718 = vrot.slane %v717, 2
        %v719 = vadd.f32 %v717, %v718
        %v720 = vrot.slane %v719, 1
        %v721 = vadd.f32 %v719, %v720
        %v722 = vrot.slane %v713, 4
        %v723 = vadd.f32 %v713, %v722
        %v724 = vrot.slane %v723, 2
        %v725 = vadd.f32 %v723, %v724
        %v726 = vrot.slane %v725, 1
        %v727 = vadd.f32 %v725, %v726
        %v728 = vrot.slane %v714, 4
        %v729 = vadd.f32 %v714, %v728
        %v730 = vrot.slane %v729, 2
        %v731 = vadd.f32 %v729, %v730
        %v732 = vrot.slane %v731, 1
        %v733 = vadd.f32 %v731, %v732
        %v734 = vrot.slane %v715, 4
        %v735 = vadd.f32 %v715, %v734
        %v736 = vrot.slane %v735, 2
        %v737 = vadd.f32 %v735, %v736
        %v738 = vrot.slane %v737, 1
        %v739 = vadd.f32 %v737, %v738
        %v740 = vmul.f32 %v721, %v264
        %v741 = vmul.f32 %v727, %v264
        %v742 = vmul.f32 %v733, %v264
        %v743 = vmul.f32 %v739, %v264
        %v744 = vmul.f32 %v708, %v708
        %v745 = vmul.f32 %v709, %v709
        %v746 = vmul.f32 %v710, %v710
        %v747 = vmul.f32 %v711, %v711
        %v748 = vsub.f32 %v740, %v744
        %v749 = vsub.f32 %v741, %v745
        %v750 = vsub.f32 %v742, %v746
        %v751 = vsub.f32 %v743, %v747
        %v752 = vmax.f32 %v748, 0.0
        %v753 = vmax.f32 %v749, 0.0
        %v754 = vmax.f32 %v750, 0.0
        %v755 = vmax.f32 %v751, 0.0
        %v756 = vsub.f32 %v670, %v708
        %v757 = vsub.f32 %v673, %v709
        %v758 = vsub.f32 %v678, %v710
        %v759 = vsub.f32 %v681, %v711
        %v760 = vadd.f32 %v752, 1e-05
        %v761 = vadd.f32 %v753, 1e-05
        %v762 = vadd.f32 %v754, 1e-05
        %v763 = vadd.f32 %v755, 1e-05
        %v764 = vrsqrt.pop %v760
        %v765 = vrsqrt.pop %v761
        %v766 = vrsqrt.pop %v762
        %v767 = vrsqrt.pop %v763
        %v768 = vmul.f32 %v756, %v764
        %v769 = vmul.f32 %v757, %v765
        %v770 = vmul.f32 %v758, %v766
        %v771 = vmul.f32 %v759, %v767
        %v772 = vlaneseq
        %v773 = vshrl.u32 %v772, 7
        %v774 = vsub.s32 4, %v773
        %v775 = vrot.slane %v234, %v774
        %v776 = vmul.f32 %v768, %v775
        %v777 = vmul.f32 %v769, %v775
        %v778 = vmul.f32 %v770, %v775
        %v779 = vmul.f32 %v771, %v775
        %v780 = vlaneseq
        %v781 = vshrl.u32 %v780, 7
        %v782 = vsub.s32 5, %v781
        %v783 = vrot.slane %v234, %v782
        %v784 = vadd.f32 %v776, %v783
        %v785 = vadd.f32 %v777, %v783
        %v786 = vadd.f32 %v778, %v783
        %v787 = vadd.f32 %v779, %v783
        %v788 = vmax.f32 %v784, 0.0
        %v789 = vmax.f32 %v785, 0.0
        %v790 = vmax.f32 %v786, 0.0
        %v791 = vmax.f32 %v787, 0.0
        %v792 = vpack.c.bf16 %v789, %v788
        %v793 = vpack.c.bf16 %v791, %v790
        %s794 = scalar_lea.vmem [#allocation6], 128
        %v795 = vld [vmem:[%s794] sm:$0xf]
        %v796 = vld [vmem:[%s794 + $0x4] sm:$0xf]
        %v797 = vld [vmem:[%s794 + $0x8] sm:$0xf]
        %v798 = vld [vmem:[%s794 + $0xc] sm:$0xf]
        %v799 = vld [vmem:[%s794 + $0x10] sm:$0xf]
        %v800 = vld [vmem:[%s794 + $0x14] sm:$0xf]
        %v801 = vld [vmem:[%s794 + $0x18] sm:$0xf]
        %v802 = vld [vmem:[%s794 + $0x1c] sm:$0xf]
        %v803 = vld [vmem:[%s794 + $0x20] sm:$0xf]
        %v804 = vld [vmem:[%s794 + $0x24] sm:$0xf]
        %v805 = vld [vmem:[%s794 + $0x28] sm:$0xf]
        %v806 = vld [vmem:[%s794 + $0x2c] sm:$0xf]
        %v807 = vld [vmem:[%s794 + $0x30] sm:$0xf]
        %v808 = vld [vmem:[%s794 + $0x34] sm:$0xf]
        %v809 = vld [vmem:[%s794 + $0x38] sm:$0xf]
        %v810 = vld [vmem:[%s794 + $0x3c] sm:$0xf]
        %v827 = vunpack.c.l.b16 %v795
        %v828 = vunpack.c.l.b16 %v796
        %v829 = vunpack.c.l.b16 %v797
        %v830 = vunpack.c.l.b16 %v798
        %v831 = vunpack.c.l.b16 %v799
        %v832 = vunpack.c.l.b16 %v800
        %v833 = vunpack.c.l.b16 %v801
        %v834 = vunpack.c.l.b16 %v802
        %v835 = vunpack.c.l.b16 %v803
        %v836 = vunpack.c.l.b16 %v804
        %v837 = vunpack.c.l.b16 %v805
        %v838 = vunpack.c.l.b16 %v806
        %v839 = vunpack.c.l.b16 %v807
        %v840 = vunpack.c.l.b16 %v808
        %v841 = vunpack.c.l.b16 %v809
        %v842 = vunpack.c.l.b16 %v810
        %v843 = vpack.c.b16 %v828, %v827
        %v844 = vpack.c.b16 %v830, %v829
        %v845 = vpack.c.b16 %v832, %v831
        %v846 = vpack.c.b16 %v834, %v833
        %v847 = vpack.c.b16 %v836, %v835
        %v848 = vpack.c.b16 %v838, %v837
        %v849 = vpack.c.b16 %v840, %v839
        %v850 = vpack.c.b16 %v842, %v841
        %859 = vmatprep.subr.bf16.mxu0 0
        %860 = vmatpush1.bf16.msra.mxu0 %v843
        %861 = vmatprep.subr.bf16.mxu0 0
        %862 = vmatpush1.bf16.msra.mxu0 %v844
        %863 = vmatprep.subr.bf16.mxu0 0
        %864 = vmatpush1.bf16.msra.mxu0 %v845
        %865 = vmatprep.subr.bf16.mxu0 0
        %866 = vmatpush1.bf16.msra.mxu0 %v846
        %867 = vmatprep.subr.bf16.mxu0 0
        %868 = vmatpush1.bf16.msra.mxu0 %v847
        %869 = vmatprep.subr.bf16.mxu0 0
        %870 = vmatpush1.bf16.msra.mxu0 %v848
        %871 = vmatprep.subr.bf16.mxu0 0
        %872 = vmatpush1.bf16.msra.mxu0 %v849
        %873 = vmatprep.subr.bf16.mxu0 0
        %874 = vmatpush1.bf16.msra.mxu0 %v850
        %875 = vmatprep.subr.bf16.mxu0 0
        %876 = vmatpush1.bf16.msra.mxu0 0
        %877 = vmatprep.subr.bf16.mxu0 0
        %878 = vmatpush1.bf16.msra.mxu0 0
        %879 = vmatprep.subr.bf16.mxu0 0
        %880 = vmatpush1.bf16.msra.mxu0 0
        %881 = vmatprep.subr.bf16.mxu0 0
        %882 = vmatpush1.bf16.msra.mxu0 0
        %883 = vmatprep.subr.bf16.mxu0 0
        %884 = vmatpush1.bf16.msra.mxu0 0
        %885 = vmatprep.subr.bf16.mxu0 0
        %886 = vmatpush1.bf16.msra.mxu0 0
        %887 = vmatprep.subr.bf16.mxu0 0
        %888 = vmatpush1.bf16.msra.mxu0 0
        %889 = vmatprep.subr.bf16.mxu0 0
        %890 = vmatpush1.bf16.msra.mxu0 0
        %891 = vmatprep.mubr.bf16.mxu0 0
        %892 = vmatmul.mubr.bf16.gmra.mrb[0].mxu0 %v792
        %v893 = vpop.f32.mrb[0].mxu0
        %v894 = vadd.f32 0.0, %v893
        %v895 = vpop.f32.mrb[0].mxu0
        %v896 = vpop.f32.mrb[0].mxu0
        %v897 = vadd.f32 0.0, %v896
        %v898 = vpop.f32.mrb[0].mxu0
        %899 = vmatprep.mubr.bf16.mxu0 0
        %900 = vmatmul.mubr.bf16.gmra.mrb[0].mxu0 %v793
        %v901 = vpop.f32.mrb[0].mxu0
        %v902 = vadd.f32 0.0, %v901
        %v903 = vpop.f32.mrb[0].mxu0
        %v904 = vpop.f32.mrb[0].mxu0
        %v905 = vadd.f32 0.0, %v904
        %v906 = vpop.f32.mrb[0].mxu0
        %907 = vdwg.mxu0
        %v908 = vrot.slane %v894, 4
        %v909 = vadd.f32 %v894, %v908
        %v910 = vrot.slane %v909, 2
        %v911 = vadd.f32 %v909, %v910
        %v912 = vrot.slane %v911, 1
        %v913 = vadd.f32 %v911, %v912
        %v914 = vrot.slane %v897, 4
        %v915 = vadd.f32 %v897, %v914
        %v916 = vrot.slane %v915, 2
        %v917 = vadd.f32 %v915, %v916
        %v918 = vrot.slane %v917, 1
        %v919 = vadd.f32 %v917, %v918
        %v920 = vrot.slane %v902, 4
        %v921 = vadd.f32 %v902, %v920
        %v922 = vrot.slane %v921, 2
        %v923 = vadd.f32 %v921, %v922
        %v924 = vrot.slane %v923, 1
        %v925 = vadd.f32 %v923, %v924
        %v926 = vrot.slane %v905, 4
        %v927 = vadd.f32 %v905, %v926
        %v928 = vrot.slane %v927, 2
        %v929 = vadd.f32 %v927, %v928
        %v930 = vrot.slane %v929, 1
        %v931 = vadd.f32 %v929, %v930
        %v932 = vmul.f32 %v913, %v264
        %v933 = vmul.f32 %v919, %v264
        %v934 = vmul.f32 %v925, %v264
        %v935 = vmul.f32 %v931, %v264
        %v936 = vmul.f32 %v894, %v894
        %v937 = vmul.f32 %v897, %v897
        %v938 = vmul.f32 %v902, %v902
        %v939 = vmul.f32 %v905, %v905
        %v940 = vrot.slane %v936, 4
        %v941 = vadd.f32 %v936, %v940
        %v942 = vrot.slane %v941, 2
        %v943 = vadd.f32 %v941, %v942
        %v944 = vrot.slane %v943, 1
        %v945 = vadd.f32 %v943, %v944
        %v946 = vrot.slane %v937, 4
        %v947 = vadd.f32 %v937, %v946
        %v948 = vrot.slane %v947, 2
        %v949 = vadd.f32 %v947, %v948
        %v950 = vrot.slane %v949, 1
        %v951 = vadd.f32 %v949, %v950
        %v952 = vrot.slane %v938, 4
        %v953 = vadd.f32 %v938, %v952
        %v954 = vrot.slane %v953, 2
        %v955 = vadd.f32 %v953, %v954
        %v956 = vrot.slane %v955, 1
        %v957 = vadd.f32 %v955, %v956
        %v958 = vrot.slane %v939, 4
        %v959 = vadd.f32 %v939, %v958
        %v960 = vrot.slane %v959, 2
        %v961 = vadd.f32 %v959, %v960
        %v962 = vrot.slane %v961, 1
        %v963 = vadd.f32 %v961, %v962
        %v964 = vmul.f32 %v945, %v264
        %v965 = vmul.f32 %v951, %v264
        %v966 = vmul.f32 %v957, %v264
        %v967 = vmul.f32 %v963, %v264
        %v968 = vmul.f32 %v932, %v932
        %v969 = vmul.f32 %v933, %v933
        %v970 = vmul.f32 %v934, %v934
        %v971 = vmul.f32 %v935, %v935
        %v972 = vsub.f32 %v964, %v968
        %v973 = vsub.f32 %v965, %v969
        %v974 = vsub.f32 %v966, %v970
        %v975 = vsub.f32 %v967, %v971
        %v976 = vmax.f32 %v972, 0.0
        %v977 = vmax.f32 %v973, 0.0
        %v978 = vmax.f32 %v974, 0.0
        %v979 = vmax.f32 %v975, 0.0
        %v980 = vsub.f32 %v894, %v932
        %v981 = vsub.f32 %v897, %v933
        %v982 = vsub.f32 %v902, %v934
        %v983 = vsub.f32 %v905, %v935
        %v984 = vadd.f32 %v976, 1e-05
        %v985 = vadd.f32 %v977, 1e-05
        %v986 = vadd.f32 %v978, 1e-05
        %v987 = vadd.f32 %v979, 1e-05
        %v988 = vrsqrt.pop %v984
        %v989 = vrsqrt.pop %v985
        %v990 = vrsqrt.pop %v986
        %v991 = vrsqrt.pop %v987
        %v992 = vmul.f32 %v980, %v988
        %v993 = vmul.f32 %v981, %v989
        %v994 = vmul.f32 %v982, %v990
        %v995 = vmul.f32 %v983, %v991
        %v996 = vlaneseq
        %v997 = vshrl.u32 %v996, 7
        %v998 = vsub.s32 6, %v997
        %v999 = vrot.slane %v234, %v998
        %v1000 = vmul.f32 %v992, %v999
        %v1001 = vmul.f32 %v993, %v999
        %v1002 = vmul.f32 %v994, %v999
        %v1003 = vmul.f32 %v995, %v999
        %v1004 = vlaneseq
        %v1005 = vshrl.u32 %v1004, 7
        %v1006 = vsub.s32 7, %v1005
        %v1007 = vrot.slane %v234, %v1006
        %v1008 = vadd.f32 %v1000, %v1007
        %v1009 = vadd.f32 %v1001, %v1007
        %v1010 = vadd.f32 %v1002, %v1007
        %v1011 = vadd.f32 %v1003, %v1007
        %v1012 = vmax.f32 %v1008, 0.0
        %v1013 = vmax.f32 %v1009, 0.0
        %v1014 = vmax.f32 %v1010, 0.0
        %v1015 = vmax.f32 %v1011, 0.0
        %v1016 = vpack.c.bf16 %v1013, %v1012
        %v1017 = vpack.c.bf16 %v1015, %v1014
        %s1018 = scalar_lea.vmem [#allocation6], 192
        %v1019 = vld [vmem:[%s1018] sm:$0xf]
        %v1020 = vld [vmem:[%s1018 + $0x4] sm:$0xf]
        %v1021 = vld [vmem:[%s1018 + $0x8] sm:$0xf]
        %v1022 = vld [vmem:[%s1018 + $0xc] sm:$0xf]
        %v1023 = vld [vmem:[%s1018 + $0x10] sm:$0xf]
        %v1024 = vld [vmem:[%s1018 + $0x14] sm:$0xf]
        %v1025 = vld [vmem:[%s1018 + $0x18] sm:$0xf]
        %v1026 = vld [vmem:[%s1018 + $0x1c] sm:$0xf]
        %v1027 = vld [vmem:[%s1018 + $0x20] sm:$0xf]
        %v1028 = vld [vmem:[%s1018 + $0x24] sm:$0xf]
        %v1029 = vld [vmem:[%s1018 + $0x28] sm:$0xf]
        %v1030 = vld [vmem:[%s1018 + $0x2c] sm:$0xf]
        %v1031 = vld [vmem:[%s1018 + $0x30] sm:$0xf]
        %v1032 = vld [vmem:[%s1018 + $0x34] sm:$0xf]
        %v1033 = vld [vmem:[%s1018 + $0x38] sm:$0xf]
        %v1034 = vld [vmem:[%s1018 + $0x3c] sm:$0xf]
        %v1035 = vlaneseq
        %v1036 = vshrl.u32 %v1035, 7
        %v1037 = vsub.s32 0, %v1036
        %v1038 = vrot.slane %v235, %v1037
        %v1055 = vunpack.c.l.b16 %v1019
        %v1056 = vunpack.c.l.b16 %v1020
        %v1057 = vunpack.c.l.b16 %v1021
        %v1058 = vunpack.c.l.b16 %v1022
        %v1059 = vunpack.c.l.b16 %v1023
        %v1060 = vunpack.c.l.b16 %v1024
        %v1061 = vunpack.c.l.b16 %v1025
        %v1062 = vunpack.c.l.b16 %v1026
        %v1063 = vunpack.c.l.b16 %v1027
        %v1064 = vunpack.c.l.b16 %v1028
        %v1065 = vunpack.c.l.b16 %v1029
        %v1066 = vunpack.c.l.b16 %v1030
        %v1067 = vunpack.c.l.b16 %v1031
        %v1068 = vunpack.c.l.b16 %v1032
        %v1069 = vunpack.c.l.b16 %v1033
        %v1070 = vunpack.c.l.b16 %v1034
        %v1071 = vpack.c.b16 %v1056, %v1055
        %v1072 = vpack.c.b16 %v1058, %v1057
        %v1073 = vpack.c.b16 %v1060, %v1059
        %v1074 = vpack.c.b16 %v1062, %v1061
        %v1075 = vpack.c.b16 %v1064, %v1063
        %v1076 = vpack.c.b16 %v1066, %v1065
        %v1077 = vpack.c.b16 %v1068, %v1067
        %v1078 = vpack.c.b16 %v1070, %v1069
        %1087 = vmatprep.subr.bf16.mxu0 0
        %1088 = vmatpush1.bf16.msra.mxu0 %v1071
        %1089 = vmatprep.subr.bf16.mxu0 0
        %1090 = vmatpush1.bf16.msra.mxu0 %v1072
        %1091 = vmatprep.subr.bf16.mxu0 0
        %1092 = vmatpush1.bf16.msra.mxu0 %v1073
        %1093 = vmatprep.subr.bf16.mxu0 0
        %1094 = vmatpush1.bf16.msra.mxu0 %v1074
        %1095 = vmatprep.subr.bf16.mxu0 0
        %1096 = vmatpush1.bf16.msra.mxu0 %v1075
        %1097 = vmatprep.subr.bf16.mxu0 0
        %1098 = vmatpush1.bf16.msra.mxu0 %v1076
        %1099 = vmatprep.subr.bf16.mxu0 0
        %1100 = vmatpush1.bf16.msra.mxu0 %v1077
        %1101 = vmatprep.subr.bf16.mxu0 0
        %1102 = vmatpush1.bf16.msra.mxu0 %v1078
        %1103 = vmatprep.subr.bf16.mxu0 0
        %1104 = vmatpush1.bf16.msra.mxu0 0
        %1105 = vmatprep.subr.bf16.mxu0 0
        %1106 = vmatpush1.bf16.msra.mxu0 0
        %1107 = vmatprep.subr.bf16.mxu0 0
        %1108 = vmatpush1.bf16.msra.mxu0 0
        %1109 = vmatprep.subr.bf16.mxu0 0
        %1110 = vmatpush1.bf16.msra.mxu0 0
        %1111 = vmatprep.subr.bf16.mxu0 0
        %1112 = vmatpush1.bf16.msra.mxu0 0
        %1113 = vmatprep.subr.bf16.mxu0 0
        %1114 = vmatpush1.bf16.msra.mxu0 0
        %1115 = vmatprep.subr.bf16.mxu0 0
        %1116 = vmatpush1.bf16.msra.mxu0 0
        %1117 = vmatprep.subr.bf16.mxu0 0
        %1118 = vmatpush1.bf16.msra.mxu0 0
        %1119 = vmatprep.mubr.bf16.mxu0 0
        %1120 = vmatmul.mubr.bf16.gmra.mrb[0].mxu0 %v1016
        %v1121 = vpop.f32.mrb[0].mxu0
        %v1122 = vadd.f32 %v1038, %v1121
        %v1123 = vpop.f32.mrb[0].mxu0
        %v1124 = vpop.f32.mrb[0].mxu0
        %v1125 = vadd.f32 %v1038, %v1124
        %v1126 = vpop.f32.mrb[0].mxu0
        %1127 = vmatprep.mubr.bf16.mxu0 0
        %1128 = vmatmul.mubr.bf16.gmra.mrb[0].mxu0 %v1017
        %v1129 = vpop.f32.mrb[0].mxu0
        %v1130 = vadd.f32 %v1038, %v1129
        %v1131 = vpop.f32.mrb[0].mxu0
        %v1132 = vpop.f32.mrb[0].mxu0
        %v1133 = vadd.f32 %v1038, %v1132
        %v1134 = vpop.f32.mrb[0].mxu0
        %1135 = vdwg.mxu0
        %v1136 = vsub.f32 0.0, %v1122
        %v1137 = vsub.f32 0.0, %v1125
        %v1138 = vsub.f32 0.0, %v1130
        %v1139 = vsub.f32 0.0, %v1133
        %v1140 = vmul.f32 %v1136, 1.442695
        %v1141 = vpow.pop %v1140
        %v1142 = vmul.f32 %v1137, 1.442695
        %v1143 = vpow.pop %v1142
        %v1144 = vmul.f32 %v1138, 1.442695
        %v1145 = vpow.pop %v1144
        %v1146 = vmul.f32 %v1139, 1.442695
        %v1147 = vpow.pop %v1146
        %v1148 = vadd.f32 %v1141, 1.0
        %v1149 = vadd.f32 %v1143, 1.0
        %v1150 = vadd.f32 %v1145, 1.0
        %v1151 = vadd.f32 %v1147, 1.0
        %v1152 = vrcp.pop %v1148
        %v1153 = vrcp.pop %v1149
        %v1154 = vrcp.pop %v1150
        %v1155 = vrcp.pop %v1151
        %1156 = vst [vmem:[%s217] sm:$0xff] %v1152
        %1157 = vst [vmem:[%s217 + $0x8] sm:$0xff] %v1153
        %1158 = vst [vmem:[%s217 + $0x10] sm:$0xff] %v1154
        %1159 = vst [vmem:[%s217 + $0x18] sm:$0xff] %v1155
        %s1160 = sand.u32 %s97, 1
        %s1161 = scalar_lea.sflag [#allocation5], %s1160
        %s1162 = sand.u32 %s97, 1
        %s1163 = smul.addr %s1162, 32
        %s1164 = scalar_lea.vmem [#allocation9], %s1163
        // Predicated region
        $region45: #{tpu_custom_call.1} parent=31 // pred_check
          %p1165 = pneg %p107
        $region46: #{tpu_custom_call.1} parent=31 // pred_check_branch
          %1167 = sbr.rel (%p1165) target = $region48
        $region47: #{tpu_custom_call.1} parent=31 // pred_region
          %s1168 = smul.u32 4, %s21
          %s1170 = ssub.s32 512, 512
          %1171 = vsyncadd %s1161, %s1170
          %s1172 = smul.addr %s1168, 128
          %s1173 = scalar_lea.hbm %s3, %s1172
          %s1174 = sshll.u32 %s1164, 4
          %s1175 = int_to_ptr.vmem [resolvable:$true] %s1174
          %1180 = dma.vmem_to_hbm [thread:$0]  %s1175, 512, %s1173, %s1161, 128, 128, 8
        $region48: #{tpu_custom_call.1} parent=31 // pred_fallthru
          _
      $region32: #{tpu_custom_call.1} parent=5 // pred_fallthru
        _
      %p1181 = scmp.le.s32.totalorder 2, %s16
      // Predicated region
      $region49: #{tpu_custom_call.1} parent=5 // pred_check
        %p1182 = pneg %p1181
      $region50: #{tpu_custom_call.1} parent=5 // pred_check_branch
        %1184 = sbr.rel (%p1182) target = $region52
      $region51: #{tpu_custom_call.1} parent=5 // pred_region
        %s1185 = ssub.s32 %s16, 2
        // Predicated region
        $region53: #{tpu_custom_call.1} parent=51 // pred_check
          %p1186 = pneg %p113
        $region54: #{tpu_custom_call.1} parent=51 // pred_check_branch
          %1188 = sbr.rel (%p1186) target = $region56
        $region55: #{tpu_custom_call.1} parent=51 // pred_region
          %s1189 = sand.u32 %s98, 1
          %s1190 = scalar_lea.sflag [#allocation5], %s1189
          %s1191 = sand.u32 %s98, 1
          %s1192 = smul.addr %s1191, 32
          %s1193 = scalar_lea.vmem [#allocation9], %s1192
          %1194 = dma.done %s1190, 512
        $region56: #{tpu_custom_call.1} parent=51 // pred_fallthru
          _
      $region52: #{tpu_custom_call.1} parent=5 // pred_fallthru
        _
    $region6: #{tpu_custom_call.1} parent=1 // loop_footer
      %s20 = sadd.s32 1, %s16
    $region7: #{tpu_custom_call.1} parent=1 // loop_footer_branch
      %15 = sbr.rel target = $region3
    $region8: #{tpu_custom_call.1} parent=1 // loop_exit
      _
    %1195 = vsyncpa [#allocation4], 1
    %s1196 = scalar_lea.sflag [#allocation4], 1
    %1197 = vsyncpa %s1196, 1
    %1198 = vsyncpa [#allocation7], 1
    %1199 = vsyncpa [#allocation5], 1
    %s1200 = scalar_lea.sflag [#allocation5], 1
    %1201 = vsyncpa %s1200, 1

</llo_original>
